<compile_context>
chip_gen: v6e
topology: v6e:2x2x1
jax: 0.10.0
libtpu: 0.0.40
codegen_flags: <defaults>
</compile_context>

<pallas_src>
import jax
import jax.numpy as jnp
from jax.experimental import pallas as pl
from jax.experimental.pallas import tpu as pltpu


def mlp_kernel(x_ref, w1_ref, b1_ref, w2_ref, b2_ref, w3_ref, b3_ref,
               w4_ref, b4_ref, o_ref):
    # One batch tile per grid step. Four bf16 MXU matmuls with f32
    # accumulation; bias add + ReLU on the VPU in f32; downcast to bf16 only
    # right before the next matmul / the final lane-dense store.
    x = x_ref[...].astype(jnp.bfloat16)                       # in-kernel VPU cast

    h = jnp.dot(x, w1_ref[...], preferred_element_type=jnp.float32) + b1_ref[...]
    h = jnp.maximum(h, 0.0).astype(jnp.bfloat16)

    h = jnp.dot(h, w2_ref[...], preferred_element_type=jnp.float32) + b2_ref[...]
    h = jnp.maximum(h, 0.0).astype(jnp.bfloat16)

    h = jnp.dot(h, w3_ref[...], preferred_element_type=jnp.float32) + b3_ref[...]
    h = jnp.maximum(h, 0.0).astype(jnp.bfloat16)

    h = jnp.dot(h, w4_ref[...], preferred_element_type=jnp.float32) + b4_ref[...]
    o_ref[...] = h.astype(o_ref.dtype)                        # (TB, 128) bf16 lane-dense store


def prepare_params(params, *, lane=128):
    """One-time parameter prep (hoisted out of the per-call path).

    Pads every layer's output dim up to a multiple of `lane` (128) and each
    subsequent layer's input dim to match, then casts weights to bf16.
    Biases stay f32 (added post-accumulation). Weights are (in, out), so
    x @ W + b == PyTorch's x @ W.T + b with W stored (out, in).
    """
    prepped = []
    prev_out_pad = None
    for (w, b) in params:
        d_in, d_out = w.shape
        in_pad = d_in if prev_out_pad is None else prev_out_pad
        out_pad = ((d_out + lane - 1) // lane) * lane
        wp = (jnp.zeros((in_pad, out_pad), jnp.float32)
              .at[:d_in, :d_out].set(w)).astype(jnp.bfloat16)
        bp = jnp.zeros((1, out_pad), jnp.float32).at[:, :d_out].set(b.reshape(1, -1))
        prepped.append((wp, bp))
        prev_out_pad = out_pad
    return tuple(prepped)


def network_forward(x, prepped_params, out_size, *, tb=None):
    """Fused 4-layer MLP forward.

    x: (B, D_in) f32.  prepped_params: output of prepare_params().
    Returns (B, out_size) f32.
    """
    (w1, b1), (w2, b2), (w3, b3), (w4, b4) = prepped_params
    batch, d_in = x.shape
    n_pad = w4.shape[1]

    # Default batch tile: 2 tiles keeps both v7x TensorCores fed; on v5e/v6e
    # the extra serial step is ~0.35us. Pass tb=batch there for a single step.
    if tb is None:
        if batch <= 128:
            tb = batch
        else:
            tb = ((pl.cdiv(batch, 2) + 127) // 128) * 128

    n_tiles = pl.cdiv(batch, tb)
    padded_batch = n_tiles * tb
    if padded_batch != batch:
        # Only taken for non-multiple batches; garbage rows are sliced off below.
        x = jnp.pad(x, ((0, padded_batch - batch), (0, 0)))

    # Weights/biases: constant index_map -> VMEM-resident across the batch grid.
    def const_spec(a):
        return pl.BlockSpec(a.shape, lambda i: (0,) * a.ndim)

    flops = 2 * padded_batch * (w1.shape[0] * w1.shape[1]
                                + w2.shape[0] * w2.shape[1]
                                + w3.shape[0] * w3.shape[1]
                                + w4.shape[0] * w4.shape[1])
    bytes_accessed = (padded_batch * d_in * 4                       # x read (f32)
                      + sum(w.size * 2 + b.size * 4
                            for (w, b) in prepped_params)           # params
                      + padded_batch * n_pad * 2)                   # bf16 writeback

    out_padded = pl.pallas_call(
        mlp_kernel,
        out_shape=jax.ShapeDtypeStruct((padded_batch, n_pad), jnp.bfloat16),
        grid=(n_tiles,),
        in_specs=[
            pl.BlockSpec((tb, d_in), lambda i: (i, 0)),    # activations: tiled over batch
            const_spec(w1), const_spec(b1),
            const_spec(w2), const_spec(b2),
            const_spec(w3), const_spec(b3),
            const_spec(w4), const_spec(b4),
        ],
        out_specs=pl.BlockSpec((tb, n_pad), lambda i: (i, 0)),
        compiler_params=pltpu.CompilerParams(
            dimension_semantics=("parallel",),             # batch-parallel (megacore on v7x)
        ),
        cost_estimate=pl.CostEstimate(flops=flops, transcendentals=0,
                                      bytes_accessed=bytes_accessed),
    )(x, w1, b1, w2, b2, w3, b3, w4, b4)

    return out_padded[:batch, :out_size].astype(jnp.float32)


def init_linear(key, in_features, out_features):
    # Deterministic init mimicking torch.nn.Linear default: U(-1/sqrt(in), 1/sqrt(in)).
    kw, kb = jax.random.split(key)
    bound = 1.0 / (in_features ** 0.5)
    w = jax.random.uniform(kw, (in_features, out_features), jnp.float32, -bound, bound)
    b = jax.random.uniform(kb, (out_features,), jnp.float32, -bound, bound)
    return w, b


if __name__ == "__main__":
    # Module sizes: input_size -> h1 -> h2 -> h3 -> output_size (=2 in the original script).
    batch = 256              # two 128-row batch tiles -> exercises the parallel batch grid
    input_size = 64
    hidden1, hidden2, hidden3 = 64, 32, 32
    output_size = 2

    key = jax.random.PRNGKey(0)
    kx, k1, k2, k3, k4 = jax.random.split(key, 5)

    x = jax.random.normal(kx, (batch, input_size), jnp.float32)
    params = (
        init_linear(k1, input_size, hidden1),
        init_linear(k2, hidden1, hidden2),
        init_linear(k3, hidden2, hidden3),
        init_linear(k4, hidden3, output_size),
    )

    prepped = prepare_params(params)                 # one-time pad + bf16 cast
    out = network_forward(x, prepped, output_size)
    out = jax.block_until_ready(out)
    assert out.shape == (batch, output_size)

    # Pure-JAX reference with the same bf16-operand / f32-accumulation recipe
    # and the same bf16 output store precision.
    ref = x
    for i, (w, b) in enumerate(params):
        ref = jnp.dot(ref.astype(jnp.bfloat16), w.astype(jnp.bfloat16),
                      preferred_element_type=jnp.float32) + b
        if i < 3:
            ref = jnp.maximum(ref, 0.0)
    ref = ref.astype(jnp.bfloat16).astype(jnp.float32)

    assert jnp.allclose(out, ref, atol=2e-2, rtol=2e-2), (
        float(jnp.max(jnp.abs(out - ref))))

    # TODO(synk): Dataset/DataLoader/optimizer/training loop from the original
    # script are host-side training utilities, not part of the forward pass.
    print("KERNEL_OK")
</pallas_src>

<mosaic_0001>
module attributes {stable_mosaic.version = 11 : i64} {
  func.func @mlp_kernel(%arg0: i32, %arg1: memref<128x64xf32, #tpu.memory_space<vmem>>, %arg2: memref<64x128xbf16, #tpu.memory_space<vmem>>, %arg3: memref<1x128xf32, #tpu.memory_space<vmem>>, %arg4: memref<128x128xbf16, #tpu.memory_space<vmem>>, %arg5: memref<1x128xf32, #tpu.memory_space<vmem>>, %arg6: memref<128x128xbf16, #tpu.memory_space<vmem>>, %arg7: memref<1x128xf32, #tpu.memory_space<vmem>>, %arg8: memref<128x128xbf16, #tpu.memory_space<vmem>>, %arg9: memref<1x128xf32, #tpu.memory_space<vmem>>, %arg10: memref<128x128xbf16, #tpu.memory_space<vmem>>) attributes {dimension_semantics = [#tpu.dimension_semantics<parallel>], iteration_bounds = array<i64: 2>, scalar_prefetch = 0 : i64, scratch_operands = 0 : i64, tpu.core_type = #tpu.core_type<tc>, window_params = [{transform_indices = @transform_0, window_bounds = array<i64: 128, 64>}, {pipeline_mode = #tpu.pipeline_mode<synchronous>, transform_indices = @transform_1, window_bounds = array<i64: 64, 128>}, {pipeline_mode = #tpu.pipeline_mode<synchronous>, transform_indices = @transform_2, window_bounds = array<i64: 1, 128>}, {pipeline_mode = #tpu.pipeline_mode<synchronous>, transform_indices = @transform_3, window_bounds = array<i64: 128, 128>}, {pipeline_mode = #tpu.pipeline_mode<synchronous>, transform_indices = @transform_4, window_bounds = array<i64: 1, 128>}, {pipeline_mode = #tpu.pipeline_mode<synchronous>, transform_indices = @transform_5, window_bounds = array<i64: 128, 128>}, {pipeline_mode = #tpu.pipeline_mode<synchronous>, transform_indices = @transform_6, window_bounds = array<i64: 1, 128>}, {pipeline_mode = #tpu.pipeline_mode<synchronous>, transform_indices = @transform_7, window_bounds = array<i64: 128, 128>}, {pipeline_mode = #tpu.pipeline_mode<synchronous>, transform_indices = @transform_8, window_bounds = array<i64: 1, 128>}, {transform_indices = @transform_9, window_bounds = array<i64: 128, 128>}]} {
    %c0 = arith.constant 0 : index
    %c0_0 = arith.constant 0 : index
    %0 = vector.load %arg1[%c0, %c0_0] : memref<128x64xf32, #tpu.memory_space<vmem>>, vector<128x64xf32>
    %1 = arith.truncf %0 : vector<128x64xf32> to vector<128x64xbf16>
    %c0_1 = arith.constant 0 : index
    %c0_2 = arith.constant 0 : index
    %2 = vector.load %arg2[%c0_1, %c0_2] : memref<64x128xbf16, #tpu.memory_space<vmem>>, vector<64x128xbf16>
    %cst = arith.constant dense<0.000000e+00> : vector<128x128xf32>
    %3 = tpu.matmul %1, %2, %cst {dimension_numbers = #tpu.dot_dimension_numbers<[1], [0], [0], [1], [0, 0, 1, 1], [], []>} : vector<128x64xbf16>, vector<64x128xbf16>, vector<128x128xf32> -> vector<128x128xf32>
    %c0_3 = arith.constant 0 : index
    %c0_4 = arith.constant 0 : index
    %4 = vector.load %arg3[%c0_3, %c0_4] : memref<1x128xf32, #tpu.memory_space<vmem>>, vector<1x128xf32>
    %5 = vector.broadcast %4 : vector<1x128xf32> to vector<128x128xf32>
    %6 = arith.addf %3, %5 : vector<128x128xf32>
    %cst_5 = arith.constant 0.000000e+00 : f32
    %7 = vector.broadcast %cst_5 : f32 to vector<128x128xf32>
    %8 = arith.maximumf %6, %7 : vector<128x128xf32>
    %9 = arith.truncf %8 : vector<128x128xf32> to vector<128x128xbf16>
    %c0_6 = arith.constant 0 : index
    %c0_7 = arith.constant 0 : index
    %10 = vector.load %arg4[%c0_6, %c0_7] : memref<128x128xbf16, #tpu.memory_space<vmem>>, vector<128x128xbf16>
    %cst_8 = arith.constant dense<0.000000e+00> : vector<128x128xf32>
    %11 = tpu.matmul %9, %10, %cst_8 {dimension_numbers = #tpu.dot_dimension_numbers<[1], [0], [0], [1], [0, 0, 1, 1], [], []>} : vector<128x128xbf16>, vector<128x128xbf16>, vector<128x128xf32> -> vector<128x128xf32>
    %c0_9 = arith.constant 0 : index
    %c0_10 = arith.constant 0 : index
    %12 = vector.load %arg5[%c0_9, %c0_10] : memref<1x128xf32, #tpu.memory_space<vmem>>, vector<1x128xf32>
    %13 = vector.broadcast %12 : vector<1x128xf32> to vector<128x128xf32>
    %14 = arith.addf %11, %13 : vector<128x128xf32>
    %cst_11 = arith.constant 0.000000e+00 : f32
    %15 = vector.broadcast %cst_11 : f32 to vector<128x128xf32>
    %16 = arith.maximumf %14, %15 : vector<128x128xf32>
    %17 = arith.truncf %16 : vector<128x128xf32> to vector<128x128xbf16>
    %c0_12 = arith.constant 0 : index
    %c0_13 = arith.constant 0 : index
    %18 = vector.load %arg6[%c0_12, %c0_13] : memref<128x128xbf16, #tpu.memory_space<vmem>>, vector<128x128xbf16>
    %cst_14 = arith.constant dense<0.000000e+00> : vector<128x128xf32>
    %19 = tpu.matmul %17, %18, %cst_14 {dimension_numbers = #tpu.dot_dimension_numbers<[1], [0], [0], [1], [0, 0, 1, 1], [], []>} : vector<128x128xbf16>, vector<128x128xbf16>, vector<128x128xf32> -> vector<128x128xf32>
    %c0_15 = arith.constant 0 : index
    %c0_16 = arith.constant 0 : index
    %20 = vector.load %arg7[%c0_15, %c0_16] : memref<1x128xf32, #tpu.memory_space<vmem>>, vector<1x128xf32>
    %21 = vector.broadcast %20 : vector<1x128xf32> to vector<128x128xf32>
    %22 = arith.addf %19, %21 : vector<128x128xf32>
    %cst_17 = arith.constant 0.000000e+00 : f32
    %23 = vector.broadcast %cst_17 : f32 to vector<128x128xf32>
    %24 = arith.maximumf %22, %23 : vector<128x128xf32>
    %25 = arith.truncf %24 : vector<128x128xf32> to vector<128x128xbf16>
    %c0_18 = arith.constant 0 : index
    %c0_19 = arith.constant 0 : index
    %26 = vector.load %arg8[%c0_18, %c0_19] : memref<128x128xbf16, #tpu.memory_space<vmem>>, vector<128x128xbf16>
    %cst_20 = arith.constant dense<0.000000e+00> : vector<128x128xf32>
    %27 = tpu.matmul %25, %26, %cst_20 {dimension_numbers = #tpu.dot_dimension_numbers<[1], [0], [0], [1], [0, 0, 1, 1], [], []>} : vector<128x128xbf16>, vector<128x128xbf16>, vector<128x128xf32> -> vector<128x128xf32>
    %c0_21 = arith.constant 0 : index
    %c0_22 = arith.constant 0 : index
    %28 = vector.load %arg9[%c0_21, %c0_22] : memref<1x128xf32, #tpu.memory_space<vmem>>, vector<1x128xf32>
    %29 = vector.broadcast %28 : vector<1x128xf32> to vector<128x128xf32>
    %30 = arith.addf %27, %29 : vector<128x128xf32>
    %31 = arith.truncf %30 : vector<128x128xf32> to vector<128x128xbf16>
    %c0_23 = arith.constant 0 : index
    %c0_24 = arith.constant 0 : index
    %32 = vector.load %arg10[%c0_23, %c0_24] : memref<128x128xbf16, #tpu.memory_space<vmem>>, vector<128x128xbf16>
    tpu.vector_store %arg10[%c0_23, %c0_24], %31 {strides = array<i32>} : memref<128x128xbf16, #tpu.memory_space<vmem>>, vector<128x128xbf16>,
    return
  }
  func.func @transform_0(%arg0: i32) -> (i32, i32) {
    %c0_i32 = arith.constant 0 : i32
    %c0_i32_0 = arith.constant 0 : i32
    return %arg0, %c0_i32 : i32, i32
  }
  func.func @transform_1(%arg0: i32) -> (i32, i32) {
    %c0_i32 = arith.constant 0 : i32
    %c0_i32_0 = arith.constant 0 : i32
    %c0_i32_1 = arith.constant 0 : i32
    return %c0_i32, %c0_i32_0 : i32, i32
  }
  func.func @transform_2(%arg0: i32) -> (i32, i32) {
    %c0_i32 = arith.constant 0 : i32
    %c0_i32_0 = arith.constant 0 : i32
    %c0_i32_1 = arith.constant 0 : i32
    return %c0_i32, %c0_i32_0 : i32, i32
  }
  func.func @transform_3(%arg0: i32) -> (i32, i32) {
    %c0_i32 = arith.constant 0 : i32
    %c0_i32_0 = arith.constant 0 : i32
    %c0_i32_1 = arith.constant 0 : i32
    return %c0_i32, %c0_i32_0 : i32, i32
  }
  func.func @transform_4(%arg0: i32) -> (i32, i32) {
    %c0_i32 = arith.constant 0 : i32
    %c0_i32_0 = arith.constant 0 : i32
    %c0_i32_1 = arith.constant 0 : i32
    return %c0_i32, %c0_i32_0 : i32, i32
  }
  func.func @transform_5(%arg0: i32) -> (i32, i32) {
    %c0_i32 = arith.constant 0 : i32
    %c0_i32_0 = arith.constant 0 : i32
    %c0_i32_1 = arith.constant 0 : i32
    return %c0_i32, %c0_i32_0 : i32, i32
  }
  func.func @transform_6(%arg0: i32) -> (i32, i32) {
    %c0_i32 = arith.constant 0 : i32
    %c0_i32_0 = arith.constant 0 : i32
    %c0_i32_1 = arith.constant 0 : i32
    return %c0_i32, %c0_i32_0 : i32, i32
  }
  func.func @transform_7(%arg0: i32) -> (i32, i32) {
    %c0_i32 = arith.constant 0 : i32
    %c0_i32_0 = arith.constant 0 : i32
    %c0_i32_1 = arith.constant 0 : i32
    return %c0_i32, %c0_i32_0 : i32, i32
  }
  func.func @transform_8(%arg0: i32) -> (i32, i32) {
    %c0_i32 = arith.constant 0 : i32
    %c0_i32_0 = arith.constant 0 : i32
    %c0_i32_1 = arith.constant 0 : i32
    return %c0_i32, %c0_i32_0 : i32, i32
  }
  func.func @transform_9(%arg0: i32) -> (i32, i32) {
    %c0_i32 = arith.constant 0 : i32
    %c0_i32_0 = arith.constant 0 : i32
    return %arg0, %c0_i32 : i32, i32
  }
}

</mosaic_0001>

<llo_original>
// kernel: tpu_custom_call.1
$region0: #{tpu_custom_call.1}
  #allocation0 [shape = 'u32[]', space=smem, size = 0x4, offset = 0x4, fixed_abs, tag = 'smem constant byte address 0x4 - core index']
  #allocation1 [shape = 'u32[144,128]{1,0:T(1,128)}', space=vmem, size = 0x12000, scoped, tag = 'internal scratch']
  %s0 = inlined_call_operand.vmem [shape: f32[256,64], index: 0, kind: input, shape index: {}]
  %s1 = inlined_call_operand.vmem [shape: bf16[64,128], index: 1, kind: input, shape index: {}]
  %s2 = inlined_call_operand.vmem [shape: f32[1,128], index: 2, kind: input, shape index: {}]
  %s3 = inlined_call_operand.vmem [shape: bf16[128,128], index: 3, kind: input, shape index: {}]
  %s4 = inlined_call_operand.vmem [shape: f32[1,128], index: 4, kind: input, shape index: {}]
  %s5 = inlined_call_operand.vmem [shape: bf16[128,128], index: 5, kind: input, shape index: {}]
  %s6 = inlined_call_operand.vmem [shape: f32[1,128], index: 6, kind: input, shape index: {}]
  %s7 = inlined_call_operand.vmem [shape: bf16[128,128], index: 7, kind: input, shape index: {}]
  %s8 = inlined_call_operand.vmem [shape: f32[1,128], index: 8, kind: input, shape index: {}]
  %s9 = inlined_call_operand.hbm [shape: bf16[256,128], index: 9, kind: output, shape index: {}]
  %s10 = sld [smem:[#allocation0]]
  $region69: #{tpu_custom_call.1} parent=0
    _
  %s12 = ssub.s32 1, %s10
  %s13 = scalar_select 0, %s12, %s10
  $region1: #{tpu_custom_call.1} parent=0
    #allocation2 [shape = 'u8[65536]{0}', space=vmem, size = 0x10000, scoped, tag = 'output window, operand 0']
    #allocation3 [shape = 's32[2]{0}', space=sflag, size = 0x8, scoped, tag = 'scoped memory for tpu_custom_call.1']
    %14 = vsyncpa [#allocation3], 0
    %s15 = scalar_lea.sflag [#allocation3], 1
    %16 = vsyncpa %s15, 0
    loop: start=0, step=1, limit=4
    $region2: #{tpu_custom_call.1} parent=1 // loop_pre_header
      _
    $region3: #{tpu_custom_call.1} parent=1 // loop_header
      %s18 = sphi 0, %s22
      %p19 = scmp.ge.s32.totalorder %s18, 4
      %s28 = sphi 0, %s30
      %s31 = sphi 0, %s28
      %s32 = sphi 0, %s31
      %s48 = sphi 0, %s32
      %s52 = sphi 0, %s52
      %s54 = sphi 0, %s52
      %s55 = sphi 0, %s54
      %s69 = sphi 0, %s55
      %s73 = sphi 0, %s73
      %s75 = sphi 0, %s73
      %s76 = sphi 0, %s75
      %s90 = sphi 0, %s76
      %s94 = sphi 0, %s94
      %s96 = sphi 0, %s94
      %s97 = sphi 0, %s96
      %s111 = sphi 0, %s97
      %s115 = sphi 0, %s115
      %s117 = sphi 0, %s115
      %s118 = sphi 0, %s117
      %s132 = sphi 0, %s118
      %s136 = sphi 0, %s136
      %s138 = sphi 0, %s136
      %s139 = sphi 0, %s138
      %s153 = sphi 0, %s139
      %s157 = sphi 0, %s157
      %s159 = sphi 0, %s157
      %s160 = sphi 0, %s159
      %s174 = sphi 0, %s160
      %s178 = sphi 0, %s178
      %s180 = sphi 0, %s178
      %s181 = sphi 0, %s180
      %s195 = sphi 0, %s181
      %s199 = sphi 0, %s199
      %s201 = sphi 0, %s199
      %s202 = sphi 0, %s201
      %s216 = sphi 0, %s202
      %s222 = sphi 0, %s224
      %s225 = sphi 0, %s222
      %s226 = sphi 0, %s225
      %s242 = sphi 0, %s226
    $region4: #{tpu_custom_call.1} parent=1 // loop_header_branch
      %21 = sbr.rel (%p19) target = $region8
    $region5: #{tpu_custom_call.1} parent=1 // loop_body
      %s23 = ssub.s32 %s18, 1
      %s24 = ssub.s32 %s18, 2
      %s25 = sadd.s32 %s18, 1
      %s26 = ssub.s32 %s18, %s25
      %p27 = scmp.eq.s32.totalorder %s26, 0
      %s29 = sadd.s32 %s28, 1
      %s30 = scalar_select %p27, %s28, %s29
      %p33 = pneg %p27
      %p34 = scmp.eq.s32.totalorder %s18, 1
      %p35 = por %p33, %p34
      %p36 = scmp.ne.s32.totalorder %s28, %s31
      %p37 = scmp.eq.s32.totalorder %s18, 0
      %p38 = por %p36, %p37
      %p39 = scmp.ne.s32.totalorder %s28, %s31
      %p40 = scmp.eq.s32.totalorder %s23, 1
      %p41 = por %p39, %p40
      %p42 = scmp.ne.s32.totalorder %s31, %s32
      %p43 = scmp.eq.s32.totalorder %s23, 0
      %p44 = por %p42, %p43
      %p45 = scmp.ne.s32.totalorder %s31, %s32
      %p46 = scmp.eq.s32.totalorder %s24, 1
      %p47 = por %p45, %p46
      %p49 = scmp.ne.s32.totalorder %s32, %s48
      %p50 = scmp.eq.s32.totalorder %s24, 0
      %p51 = por %p49, %p50
      %s53 = sadd.s32 %s52, 1
      %p56 = scmp.eq.s32.totalorder %s18, 1
      %p57 = scmp.ne.s32.totalorder %s52, %s54
      %p58 = scmp.eq.s32.totalorder %s18, 0
      %p59 = por %p57, %p58
      %p60 = scmp.ne.s32.totalorder %s52, %s54
      %p61 = scmp.eq.s32.totalorder %s23, 1
      %p62 = por %p60, %p61
      %p63 = scmp.ne.s32.totalorder %s54, %s55
      %p64 = scmp.eq.s32.totalorder %s23, 0
      %p65 = por %p63, %p64
      %p66 = scmp.ne.s32.totalorder %s54, %s55
      %p67 = scmp.eq.s32.totalorder %s24, 1
      %p68 = por %p66, %p67
      %p70 = scmp.ne.s32.totalorder %s55, %s69
      %p71 = scmp.eq.s32.totalorder %s24, 0
      %p72 = por %p70, %p71
      %s74 = sadd.s32 %s73, 1
      %p77 = scmp.eq.s32.totalorder %s18, 1
      %p78 = scmp.ne.s32.totalorder %s73, %s75
      %p79 = scmp.eq.s32.totalorder %s18, 0
      %p80 = por %p78, %p79
      %p81 = scmp.ne.s32.totalorder %s73, %s75
      %p82 = scmp.eq.s32.totalorder %s23, 1
      %p83 = por %p81, %p82
      %p84 = scmp.ne.s32.totalorder %s75, %s76
      %p85 = scmp.eq.s32.totalorder %s23, 0
      %p86 = por %p84, %p85
      %p87 = scmp.ne.s32.totalorder %s75, %s76
      %p88 = scmp.eq.s32.totalorder %s24, 1
      %p89 = por %p87, %p88
      %p91 = scmp.ne.s32.totalorder %s76, %s90
      %p92 = scmp.eq.s32.totalorder %s24, 0
      %p93 = por %p91, %p92
      %s95 = sadd.s32 %s94, 1
      %p98 = scmp.eq.s32.totalorder %s18, 1
      %p99 = scmp.ne.s32.totalorder %s94, %s96
      %p100 = scmp.eq.s32.totalorder %s18, 0
      %p101 = por %p99, %p100
      %p102 = scmp.ne.s32.totalorder %s94, %s96
      %p103 = scmp.eq.s32.totalorder %s23, 1
      %p104 = por %p102, %p103
      %p105 = scmp.ne.s32.totalorder %s96, %s97
      %p106 = scmp.eq.s32.totalorder %s23, 0
      %p107 = por %p105, %p106
      %p108 = scmp.ne.s32.totalorder %s96, %s97
      %p109 = scmp.eq.s32.totalorder %s24, 1
      %p110 = por %p108, %p109
      %p112 = scmp.ne.s32.totalorder %s97, %s111
      %p113 = scmp.eq.s32.totalorder %s24, 0
      %p114 = por %p112, %p113
      %s116 = sadd.s32 %s115, 1
      %p119 = scmp.eq.s32.totalorder %s18, 1
      %p120 = scmp.ne.s32.totalorder %s115, %s117
      %p121 = scmp.eq.s32.totalorder %s18, 0
      %p122 = por %p120, %p121
      %p123 = scmp.ne.s32.totalorder %s115, %s117
      %p124 = scmp.eq.s32.totalorder %s23, 1
      %p125 = por %p123, %p124
      %p126 = scmp.ne.s32.totalorder %s117, %s118
      %p127 = scmp.eq.s32.totalorder %s23, 0
      %p128 = por %p126, %p127
      %p129 = scmp.ne.s32.totalorder %s117, %s118
      %p130 = scmp.eq.s32.totalorder %s24, 1
      %p131 = por %p129, %p130
      %p133 = scmp.ne.s32.totalorder %s118, %s132
      %p134 = scmp.eq.s32.totalorder %s24, 0
      %p135 = por %p133, %p134
      %s137 = sadd.s32 %s136, 1
      %p140 = scmp.eq.s32.totalorder %s18, 1
      %p141 = scmp.ne.s32.totalorder %s136, %s138
      %p142 = scmp.eq.s32.totalorder %s18, 0
      %p143 = por %p141, %p142
      %p144 = scmp.ne.s32.totalorder %s136, %s138
      %p145 = scmp.eq.s32.totalorder %s23, 1
      %p146 = por %p144, %p145
      %p147 = scmp.ne.s32.totalorder %s138, %s139
      %p148 = scmp.eq.s32.totalorder %s23, 0
      %p149 = por %p147, %p148
      %p150 = scmp.ne.s32.totalorder %s138, %s139
      %p151 = scmp.eq.s32.totalorder %s24, 1
      %p152 = por %p150, %p151
      %p154 = scmp.ne.s32.totalorder %s139, %s153
      %p155 = scmp.eq.s32.totalorder %s24, 0
      %p156 = por %p154, %p155
      %s158 = sadd.s32 %s157, 1
      %p161 = scmp.eq.s32.totalorder %s18, 1
      %p162 = scmp.ne.s32.totalorder %s157, %s159
      %p163 = scmp.eq.s32.totalorder %s18, 0
      %p164 = por %p162, %p163
      %p165 = scmp.ne.s32.totalorder %s157, %s159
      %p166 = scmp.eq.s32.totalorder %s23, 1
      %p167 = por %p165, %p166
      %p168 = scmp.ne.s32.totalorder %s159, %s160
      %p169 = scmp.eq.s32.totalorder %s23, 0
      %p170 = por %p168, %p169
      %p171 = scmp.ne.s32.totalorder %s159, %s160
      %p172 = scmp.eq.s32.totalorder %s24, 1
      %p173 = por %p171, %p172
      %p175 = scmp.ne.s32.totalorder %s160, %s174
      %p176 = scmp.eq.s32.totalorder %s24, 0
      %p177 = por %p175, %p176
      %s179 = sadd.s32 %s178, 1
      %p182 = scmp.eq.s32.totalorder %s18, 1
      %p183 = scmp.ne.s32.totalorder %s178, %s180
      %p184 = scmp.eq.s32.totalorder %s18, 0
      %p185 = por %p183, %p184
      %p186 = scmp.ne.s32.totalorder %s178, %s180
      %p187 = scmp.eq.s32.totalorder %s23, 1
      %p188 = por %p186, %p187
      %p189 = scmp.ne.s32.totalorder %s180, %s181
      %p190 = scmp.eq.s32.totalorder %s23, 0
      %p191 = por %p189, %p190
      %p192 = scmp.ne.s32.totalorder %s180, %s181
      %p193 = scmp.eq.s32.totalorder %s24, 1
      %p194 = por %p192, %p193
      %p196 = scmp.ne.s32.totalorder %s181, %s195
      %p197 = scmp.eq.s32.totalorder %s24, 0
      %p198 = por %p196, %p197
      %s200 = sadd.s32 %s199, 1
      %p203 = scmp.eq.s32.totalorder %s18, 1
      %p204 = scmp.ne.s32.totalorder %s199, %s201
      %p205 = scmp.eq.s32.totalorder %s18, 0
      %p206 = por %p204, %p205
      %p207 = scmp.ne.s32.totalorder %s199, %s201
      %p208 = scmp.eq.s32.totalorder %s23, 1
      %p209 = por %p207, %p208
      %p210 = scmp.ne.s32.totalorder %s201, %s202
      %p211 = scmp.eq.s32.totalorder %s23, 0
      %p212 = por %p210, %p211
      %p213 = scmp.ne.s32.totalorder %s201, %s202
      %p214 = scmp.eq.s32.totalorder %s24, 1
      %p215 = por %p213, %p214
      %p217 = scmp.ne.s32.totalorder %s202, %s216
      %p218 = scmp.eq.s32.totalorder %s24, 0
      %p219 = por %p217, %p218
      %s220 = ssub.s32 %s18, %s25
      %p221 = scmp.eq.s32.totalorder %s220, 0
      %s223 = sadd.s32 %s222, 1
      %s224 = scalar_select %p221, %s222, %s223
      %p227 = pneg %p221
      %p228 = scmp.eq.s32.totalorder %s18, 1
      %p229 = por %p227, %p228
      %p230 = scmp.ne.s32.totalorder %s222, %s225
      %p231 = scmp.eq.s32.totalorder %s18, 0
      %p232 = por %p230, %p231
      %p233 = scmp.ne.s32.totalorder %s222, %s225
      %p234 = scmp.eq.s32.totalorder %s23, 1
      %p235 = por %p233, %p234
      %p236 = scmp.ne.s32.totalorder %s225, %s226
      %p237 = scmp.eq.s32.totalorder %s23, 0
      %p238 = por %p236, %p237
      %p239 = scmp.ne.s32.totalorder %s225, %s226
      %p240 = scmp.eq.s32.totalorder %s24, 1
      %p241 = por %p239, %p240
      %p243 = scmp.ne.s32.totalorder %s226, %s242
      %p244 = scmp.eq.s32.totalorder %s24, 0
      %p245 = por %p243, %p244
      %p246 = scmp.le.s32.totalorder 1, %s18
      %p247 = scmp.lt.s32.totalorder %s18, 3
      %p248 = pnand %p246, %p247
      %p249 = pneg %p248
      // Predicated region
      $region9: #{tpu_custom_call.1} parent=5 // pred_check
        _
      $region10: #{tpu_custom_call.1} parent=5 // pred_check_branch
        %251 = sbr.rel (%p248) target = $region12
      $region11: #{tpu_custom_call.1} parent=5 // pred_region
        %s252 = ssub.s32 %s18, 1
        // Predicated region
        $region13: #{tpu_custom_call.1} parent=11 // pred_check
          %p253 = pneg %p65
        $region14: #{tpu_custom_call.1} parent=11 // pred_check_branch
          %255 = sbr.rel (%p253) target = $region16
        $region15: #{tpu_custom_call.1} parent=11 // pred_region
          _
        $region16: #{tpu_custom_call.1} parent=11 // pred_fallthru
          _
        // Predicated region
        $region17: #{tpu_custom_call.1} parent=11 // pred_check
          %p256 = pneg %p86
        $region18: #{tpu_custom_call.1} parent=11 // pred_check_branch
          %258 = sbr.rel (%p256) target = $region20
        $region19: #{tpu_custom_call.1} parent=11 // pred_region
          _
        $region20: #{tpu_custom_call.1} parent=11 // pred_fallthru
          _
        // Predicated region
        $region21: #{tpu_custom_call.1} parent=11 // pred_check
          %p259 = pneg %p107
        $region22: #{tpu_custom_call.1} parent=11 // pred_check_branch
          %261 = sbr.rel (%p259) target = $region24
        $region23: #{tpu_custom_call.1} parent=11 // pred_region
          _
        $region24: #{tpu_custom_call.1} parent=11 // pred_fallthru
          _
        // Predicated region
        $region25: #{tpu_custom_call.1} parent=11 // pred_check
          %p262 = pneg %p128
        $region26: #{tpu_custom_call.1} parent=11 // pred_check_branch
          %264 = sbr.rel (%p262) target = $region28
        $region27: #{tpu_custom_call.1} parent=11 // pred_region
          _
        $region28: #{tpu_custom_call.1} parent=11 // pred_fallthru
          _
        // Predicated region
        $region29: #{tpu_custom_call.1} parent=11 // pred_check
          %p265 = pneg %p149
        $region30: #{tpu_custom_call.1} parent=11 // pred_check_branch
          %267 = sbr.rel (%p265) target = $region32
        $region31: #{tpu_custom_call.1} parent=11 // pred_region
          _
        $region32: #{tpu_custom_call.1} parent=11 // pred_fallthru
          _
        // Predicated region
        $region33: #{tpu_custom_call.1} parent=11 // pred_check
          %p268 = pneg %p170
        $region34: #{tpu_custom_call.1} parent=11 // pred_check_branch
          %270 = sbr.rel (%p268) target = $region36
        $region35: #{tpu_custom_call.1} parent=11 // pred_region
          _
        $region36: #{tpu_custom_call.1} parent=11 // pred_fallthru
          _
        // Predicated region
        $region37: #{tpu_custom_call.1} parent=11 // pred_check
          %p271 = pneg %p191
        $region38: #{tpu_custom_call.1} parent=11 // pred_check_branch
          %273 = sbr.rel (%p271) target = $region40
        $region39: #{tpu_custom_call.1} parent=11 // pred_region
          _
        $region40: #{tpu_custom_call.1} parent=11 // pred_fallthru
          _
        // Predicated region
        $region41: #{tpu_custom_call.1} parent=11 // pred_check
          %p274 = pneg %p212
        $region42: #{tpu_custom_call.1} parent=11 // pred_check_branch
          %276 = sbr.rel (%p274) target = $region44
        $region43: #{tpu_custom_call.1} parent=11 // pred_region
          _
        $region44: #{tpu_custom_call.1} parent=11 // pred_fallthru
          _
      $region12: #{tpu_custom_call.1} parent=5 // pred_fallthru
        _
      %p277 = scmp.lt.s32.totalorder %s18, 2
      // Predicated region
      $region45: #{tpu_custom_call.1} parent=5 // pred_check
        %p278 = pneg %p277
      $region46: #{tpu_custom_call.1} parent=5 // pred_check_branch
        %280 = sbr.rel (%p278) target = $region48
      $region47: #{tpu_custom_call.1} parent=5 // pred_region
        // Predicated region
        $region49: #{tpu_custom_call.1} parent=47 // pred_check
          %p281 = pneg %p38
        $region50: #{tpu_custom_call.1} parent=47 // pred_check_branch
          %283 = sbr.rel (%p281) target = $region52
        $region51: #{tpu_custom_call.1} parent=47 // pred_region
          %s284 = smul.u32 16, %s18
          %p285 = scmp.lt.s32.totalorder %s284, 31
          %s286 = scalar_select %p285, %s284, 31
          %s287 = smul.addr %s286, 8
          %s288 = scalar_lea.vmem %s0, %s287
          %s289 = smul.u32 16, %s18
        $region52: #{tpu_custom_call.1} parent=47 // pred_fallthru
          _
      $region48: #{tpu_custom_call.1} parent=5 // pred_fallthru
        _
      %p290 = scmp.le.s32.totalorder 1, %s18
      %p291 = scmp.lt.s32.totalorder %s18, 3
      %p292 = pnand %p290, %p291
      %p293 = pneg %p292
      // Predicated region
      $region53: #{tpu_custom_call.1} parent=5 // pred_check
        _
      $region54: #{tpu_custom_call.1} parent=5 // pred_check_branch
        %295 = sbr.rel (%p292) target = $region56
      $region55: #{tpu_custom_call.1} parent=5 // pred_region
        %s296 = ssub.s32 %s18, 1
        %s297 = smul.u32 16, %s23
        %p298 = scmp.lt.s32.totalorder %s297, 31
        %s299 = scalar_select %p298, %s297, 31
        %s300 = smul.addr %s299, 8
        %s301 = scalar_lea.vmem %s0, %s300
        %p302 = pneg %p44
        %p303 = pneg %p41
        %p304 = pneg %p65
        %p305 = pneg %p62
        %p306 = pneg %p86
        %p307 = pneg %p83
        %p308 = pneg %p107
        %p309 = pneg %p104
        %p310 = pneg %p128
        %p311 = pneg %p125
        %p312 = pneg %p149
        %p313 = pneg %p146
        %p314 = pneg %p170
        %p315 = pneg %p167
        %p316 = pneg %p191
        %p317 = pneg %p188
        %p318 = pneg %p212
        %p319 = pneg %p209
        %p320 = pneg %p238
        %p321 = pneg %p235
        %s322 = sand.u32 %s225, 1
        %s323 = scalar_lea.sflag [#allocation3], %s322
        %s324 = sand.u32 %s225, 1
        %s325 = smul.addr %s324, 64
        %s326 = scalar_lea.vmem [#allocation2], %s325
        %s327 = smul.u32 16, %s23
        %p328 = scmp.lt.s32.totalorder %s327, 31
        %s329 = scalar_select %p328, %s327, 31
        %s330 = smul.addr %s329, 8
        %s331 = scalar_lea.vmem %s0, %s330
        %s332 = smul.u32 16, %s23
        %s333 = smul.u32 16, %s23
        %v335 = vld [vmem:[%s331] sm:$0xff]
        %v336 = vld [vmem:[%s331 + $0x8] sm:$0xff]
        %v337 = vld [vmem:[%s331 + $0x10] sm:$0xff]
        %v338 = vld [vmem:[%s331 + $0x18] sm:$0xff]
        %v339 = vld [vmem:[%s331 + $0x20] sm:$0xff]
        %v340 = vld [vmem:[%s331 + $0x28] sm:$0xff]
        %v341 = vld [vmem:[%s331 + $0x30] sm:$0xff]
        %v342 = vld [vmem:[%s331 + $0x38] sm:$0xff]
        %v343 = vld [vmem:[%s331 + $0x40] sm:$0xff]
        %v344 = vld [vmem:[%s331 + $0x48] sm:$0xff]
        %v345 = vld [vmem:[%s331 + $0x50] sm:$0xff]
        %v346 = vld [vmem:[%s331 + $0x58] sm:$0xff]
        %v347 = vld [vmem:[%s331 + $0x60] sm:$0xff]
        %v348 = vld [vmem:[%s331 + $0x68] sm:$0xff]
        %v349 = vld [vmem:[%s331 + $0x70] sm:$0xff]
        %v350 = vld [vmem:[%s331 + $0x78] sm:$0xff]
        %v351 = vpack.c.bf16 %v336, %v335
        %v352 = vpack.c.bf16 %v338, %v337
        %v353 = vpack.c.bf16 %v340, %v339
        %v354 = vpack.c.bf16 %v342, %v341
        %v355 = vpack.c.bf16 %v344, %v343
        %v356 = vpack.c.bf16 %v346, %v345
        %v357 = vpack.c.bf16 %v348, %v347
        %v358 = vpack.c.bf16 %v350, %v349
        %v359 = vld [vmem:[%s1] sm:$0xf]
        %v360 = vld [vmem:[%s1 + $0x4] sm:$0xf]
        %v361 = vld [vmem:[%s1 + $0x8] sm:$0xf]
        %v362 = vld [vmem:[%s1 + $0xc] sm:$0xf]
        %v363 = vld [vmem:[%s1 + $0x10] sm:$0xf]
        %v364 = vld [vmem:[%s1 + $0x14] sm:$0xf]
        %v365 = vld [vmem:[%s1 + $0x18] sm:$0xf]
        %v366 = vld [vmem:[%s1 + $0x1c] sm:$0xf]
        %v367 = vld [vmem:[%s2] sm:$0x1]
        %v369 = vlaneseq
        %v370 = vshrl.u32 %v369, 7
        %v371 = vsub.s32 0, %v370
        %v372 = vrot.slane %v367, %v371
        %v382 = vunpack.c.l.b16 %v359
        %v383 = vunpack.c.l.b16 %v360
        %v384 = vunpack.c.l.b16 %v361
        %v385 = vunpack.c.l.b16 %v362
        %v386 = vunpack.c.l.b16 %v363
        %v387 = vunpack.c.l.b16 %v364
        %v388 = vunpack.c.l.b16 %v365
        %v389 = vunpack.c.l.b16 %v366
        %v390 = vpack.c.b16 %v383, %v382
        %v391 = vpack.c.b16 %v385, %v384
        %v392 = vpack.c.b16 %v387, %v386
        %v393 = vpack.c.b16 %v389, %v388
        %vm398 = vcmask 523264
        %v400 = vsel %vm398, %v351, 0
        %v403 = vsel %vm398, %v352, 0
        %v406 = vsel %vm398, %v353, 0
        %v409 = vsel %vm398, %v354, 0
        %v412 = vsel %vm398, %v355, 0
        %v415 = vsel %vm398, %v356, 0
        %v418 = vsel %vm398, %v357, 0
        %v421 = vsel %vm398, %v358, 0
        %423 = vmatprep.subr.bf16.mxu0 0
        %424 = vmatpush1.bf16.msra.mxu0 0
        %425 = vmatprep.subr.bf16.mxu0 0
        %426 = vmatpush1.bf16.msra.mxu0 0
        %427 = vmatprep.subr.bf16.mxu0 0
        %428 = vmatpush1.bf16.msra.mxu0 0
        %429 = vmatprep.subr.bf16.mxu0 0
        %430 = vmatpush1.bf16.msra.mxu0 0
        %431 = vmatprep.subr.bf16.mxu0 0
        %432 = vmatpush1.bf16.msra.mxu0 %v393
        %433 = vmatprep.subr.bf16.mxu0 0
        %434 = vmatpush1.bf16.msra.mxu0 %v392
        %435 = vmatprep.subr.bf16.mxu0 0
        %436 = vmatpush1.bf16.msra.mxu0 %v391
        %437 = vmatprep.subr.bf16.mxu0 0
        %438 = vmatpush1.bf16.msra.mxu0 %v390
        %439 = vmatprep.subr.bf16.mxu0 0
        %440 = vmatpush2.bf16.msra.mxu0 0
        %441 = vmatprep.subr.bf16.mxu0 0
        %442 = vmatpush2.bf16.msra.mxu0 0
        %443 = vmatprep.subr.bf16.mxu0 0
        %444 = vmatpush2.bf16.msra.mxu0 0
        %445 = vmatprep.subr.bf16.mxu0 0
        %446 = vmatpush2.bf16.msra.mxu0 0
        %447 = vmatprep.subr.bf16.mxu0 0
        %448 = vmatpush2.bf16.msra.mxu0 0
        %449 = vmatprep.subr.bf16.mxu0 0
        %450 = vmatpush2.bf16.msra.mxu0 0
        %451 = vmatprep.subr.bf16.mxu0 0
        %452 = vmatpush2.bf16.msra.mxu0 0
        %453 = vmatprep.subr.bf16.mxu0 0
        %454 = vmatpush2.bf16.msra.mxu0 0
        %455 = vmatprep.mubr.bf16.mxu0 0
        %456 = vmatmul.mubr.bf16.gmra.mxu0 %v400
        %v457 = vpop.f32.mrf.mxu0
        %v458 = vadd.f32 %v372, %v457
        %v459 = vpop.f32.mrf.mxu0
        %v460 = vpop.f32.mrf.mxu0
        %v461 = vadd.f32 %v372, %v460
        %v462 = vpop.f32.mrf.mxu0
        %463 = vmatprep.mubr.bf16.mxu0 0
        %464 = vmatmul.mubr.bf16.gmra.mxu0 %v403
        %v465 = vpop.f32.mrf.mxu0
        %v466 = vadd.f32 %v372, %v465
        %v467 = vpop.f32.mrf.mxu0
        %v468 = vpop.f32.mrf.mxu0
        %v469 = vadd.f32 %v372, %v468
        %v470 = vpop.f32.mrf.mxu0
        %471 = vmatprep.mubr.bf16.mxu0 0
        %472 = vmatmul.mubr.bf16.gmra.mxu0 %v406
        %v473 = vpop.f32.mrf.mxu0
        %v474 = vadd.f32 %v372, %v473
        %v475 = vpop.f32.mrf.mxu0
        %v476 = vpop.f32.mrf.mxu0
        %v477 = vadd.f32 %v372, %v476
        %v478 = vpop.f32.mrf.mxu0
        %479 = vmatprep.mubr.bf16.mxu0 0
        %480 = vmatmul.mubr.bf16.gmra.mxu0 %v409
        %v481 = vpop.f32.mrf.mxu0
        %v482 = vadd.f32 %v372, %v481
        %v483 = vpop.f32.mrf.mxu0
        %v484 = vpop.f32.mrf.mxu0
        %v485 = vadd.f32 %v372, %v484
        %v486 = vpop.f32.mrf.mxu0
        %487 = vmatprep.mubr.bf16.mxu0 0
        %488 = vmatmul.mubr.bf16.gmra.mxu0 %v412
        %v489 = vpop.f32.mrf.mxu0
        %v490 = vadd.f32 %v372, %v489
        %v491 = vpop.f32.mrf.mxu0
        %v492 = vpop.f32.mrf.mxu0
        %v493 = vadd.f32 %v372, %v492
        %v494 = vpop.f32.mrf.mxu0
        %495 = vmatprep.mubr.bf16.mxu0 0
        %496 = vmatmul.mubr.bf16.gmra.mxu0 %v415
        %v497 = vpop.f32.mrf.mxu0
        %v498 = vadd.f32 %v372, %v497
        %v499 = vpop.f32.mrf.mxu0
        %v500 = vpop.f32.mrf.mxu0
        %v501 = vadd.f32 %v372, %v500
        %v502 = vpop.f32.mrf.mxu0
        %503 = vmatprep.mubr.bf16.mxu0 0
        %504 = vmatmul.mubr.bf16.gmra.mxu0 %v418
        %v505 = vpop.f32.mrf.mxu0
        %v506 = vadd.f32 %v372, %v505
        %v507 = vpop.f32.mrf.mxu0
        %v508 = vpop.f32.mrf.mxu0
        %v509 = vadd.f32 %v372, %v508
        %v510 = vpop.f32.mrf.mxu0
        %511 = vmatprep.mubr.bf16.mxu0 0
        %512 = vmatmul.mubr.bf16.gmra.mxu0 %v421
        %v513 = vpop.f32.mrf.mxu0
        %v514 = vadd.f32 %v372, %v513
        %v515 = vpop.f32.mrf.mxu0
        %v516 = vpop.f32.mrf.mxu0
        %v517 = vadd.f32 %v372, %v516
        %v518 = vpop.f32.mrf.mxu0
        %519 = vdwg.mxu0
        %v520 = vmax.f32 %v458, 0.0
        %v521 = vmax.f32 %v461, 0.0
        %v522 = vmax.f32 %v466, 0.0
        %v523 = vmax.f32 %v469, 0.0
        %v524 = vmax.f32 %v474, 0.0
        %v525 = vmax.f32 %v477, 0.0
        %v526 = vmax.f32 %v482, 0.0
        %v527 = vmax.f32 %v485, 0.0
        %v528 = vmax.f32 %v490, 0.0
        %v529 = vmax.f32 %v493, 0.0
        %v530 = vmax.f32 %v498, 0.0
        %v531 = vmax.f32 %v501, 0.0
        %v532 = vmax.f32 %v506, 0.0
        %v533 = vmax.f32 %v509, 0.0
        %v534 = vmax.f32 %v514, 0.0
        %v535 = vmax.f32 %v517, 0.0
        %v536 = vpack.c.bf16 %v521, %v520
        %v537 = vpack.c.bf16 %v523, %v522
        %v538 = vpack.c.bf16 %v525, %v524
        %v539 = vpack.c.bf16 %v527, %v526
        %v540 = vpack.c.bf16 %v529, %v528
        %v541 = vpack.c.bf16 %v531, %v530
        %v542 = vpack.c.bf16 %v533, %v532
        %v543 = vpack.c.bf16 %v535, %v534
        %v544 = vld [vmem:[%s3] sm:$0xf]
        %v545 = vld [vmem:[%s3 + $0x4] sm:$0xf]
        %v546 = vld [vmem:[%s3 + $0x8] sm:$0xf]
        %v547 = vld [vmem:[%s3 + $0xc] sm:$0xf]
        %v548 = vld [vmem:[%s3 + $0x10] sm:$0xf]
        %v549 = vld [vmem:[%s3 + $0x14] sm:$0xf]
        %v550 = vld [vmem:[%s3 + $0x18] sm:$0xf]
        %v551 = vld [vmem:[%s3 + $0x1c] sm:$0xf]
        %v552 = vld [vmem:[%s3 + $0x20] sm:$0xf]
        %v553 = vld [vmem:[%s3 + $0x24] sm:$0xf]
        %v554 = vld [vmem:[%s3 + $0x28] sm:$0xf]
        %v555 = vld [vmem:[%s3 + $0x2c] sm:$0xf]
        %v556 = vld [vmem:[%s3 + $0x30] sm:$0xf]
        %v557 = vld [vmem:[%s3 + $0x34] sm:$0xf]
        %v558 = vld [vmem:[%s3 + $0x38] sm:$0xf]
        %v559 = vld [vmem:[%s3 + $0x3c] sm:$0xf]
        %v560 = vld [vmem:[%s4] sm:$0x1]
        %v562 = vlaneseq
        %v563 = vshrl.u32 %v562, 7
        %v564 = vsub.s32 0, %v563
        %v565 = vrot.slane %v560, %v564
        %v583 = vunpack.c.l.b16 %v544
        %v584 = vunpack.c.l.b16 %v545
        %v585 = vunpack.c.l.b16 %v546
        %v586 = vunpack.c.l.b16 %v547
        %v587 = vunpack.c.l.b16 %v548
        %v588 = vunpack.c.l.b16 %v549
        %v589 = vunpack.c.l.b16 %v550
        %v590 = vunpack.c.l.b16 %v551
        %v591 = vunpack.c.l.b16 %v552
        %v592 = vunpack.c.l.b16 %v553
        %v593 = vunpack.c.l.b16 %v554
        %v594 = vunpack.c.l.b16 %v555
        %v595 = vunpack.c.l.b16 %v556
        %v596 = vunpack.c.l.b16 %v557
        %v597 = vunpack.c.l.b16 %v558
        %v598 = vunpack.c.l.b16 %v559
        %v599 = vpack.c.b16 %v584, %v583
        %v600 = vpack.c.b16 %v586, %v585
        %v601 = vpack.c.b16 %v588, %v587
        %v602 = vpack.c.b16 %v590, %v589
        %v603 = vpack.c.b16 %v592, %v591
        %v604 = vpack.c.b16 %v594, %v593
        %v605 = vpack.c.b16 %v596, %v595
        %v606 = vpack.c.b16 %v598, %v597
        %615 = vmatprep.subr.bf16.mxu0 0
        %616 = vmatpush1.bf16.msra.mxu0 %v606
        %617 = vmatprep.subr.bf16.mxu0 0
        %618 = vmatpush1.bf16.msra.mxu0 %v605
        %619 = vmatprep.subr.bf16.mxu0 0
        %620 = vmatpush1.bf16.msra.mxu0 %v604
        %621 = vmatprep.subr.bf16.mxu0 0
        %622 = vmatpush1.bf16.msra.mxu0 %v603
        %623 = vmatprep.subr.bf16.mxu0 0
        %624 = vmatpush1.bf16.msra.mxu0 %v602
        %625 = vmatprep.subr.bf16.mxu0 0
        %626 = vmatpush1.bf16.msra.mxu0 %v601
        %627 = vmatprep.subr.bf16.mxu0 0
        %628 = vmatpush1.bf16.msra.mxu0 %v600
        %629 = vmatprep.subr.bf16.mxu0 0
        %630 = vmatpush1.bf16.msra.mxu0 %v599
        %631 = vmatprep.subr.bf16.mxu0 0
        %632 = vmatpush2.bf16.msra.mxu0 0
        %633 = vmatprep.subr.bf16.mxu0 0
        %634 = vmatpush2.bf16.msra.mxu0 0
        %635 = vmatprep.subr.bf16.mxu0 0
        %636 = vmatpush2.bf16.msra.mxu0 0
        %637 = vmatprep.subr.bf16.mxu0 0
        %638 = vmatpush2.bf16.msra.mxu0 0
        %639 = vmatprep.subr.bf16.mxu0 0
        %640 = vmatpush2.bf16.msra.mxu0 0
        %641 = vmatprep.subr.bf16.mxu0 0
        %642 = vmatpush2.bf16.msra.mxu0 0
        %643 = vmatprep.subr.bf16.mxu0 0
        %644 = vmatpush2.bf16.msra.mxu0 0
        %645 = vmatprep.subr.bf16.mxu0 0
        %646 = vmatpush2.bf16.msra.mxu0 0
        %647 = vmatprep.mubr.bf16.mxu0 0
        %648 = vmatmul.mubr.bf16.gmra.mxu0 %v536
        %v649 = vpop.f32.mrf.mxu0
        %v650 = vadd.f32 %v565, %v649
        %v651 = vpop.f32.mrf.mxu0
        %v652 = vpop.f32.mrf.mxu0
        %v653 = vadd.f32 %v565, %v652
        %v654 = vpop.f32.mrf.mxu0
        %655 = vmatprep.mubr.bf16.mxu0 0
        %656 = vmatmul.mubr.bf16.gmra.mxu0 %v537
        %v657 = vpop.f32.mrf.mxu0
        %v658 = vadd.f32 %v565, %v657
        %v659 = vpop.f32.mrf.mxu0
        %v660 = vpop.f32.mrf.mxu0
        %v661 = vadd.f32 %v565, %v660
        %v662 = vpop.f32.mrf.mxu0
        %663 = vmatprep.mubr.bf16.mxu0 0
        %664 = vmatmul.mubr.bf16.gmra.mxu0 %v538
        %v665 = vpop.f32.mrf.mxu0
        %v666 = vadd.f32 %v565, %v665
        %v667 = vpop.f32.mrf.mxu0
        %v668 = vpop.f32.mrf.mxu0
        %v669 = vadd.f32 %v565, %v668
        %v670 = vpop.f32.mrf.mxu0
        %671 = vmatprep.mubr.bf16.mxu0 0
        %672 = vmatmul.mubr.bf16.gmra.mxu0 %v539
        %v673 = vpop.f32.mrf.mxu0
        %v674 = vadd.f32 %v565, %v673
        %v675 = vpop.f32.mrf.mxu0
        %v676 = vpop.f32.mrf.mxu0
        %v677 = vadd.f32 %v565, %v676
        %v678 = vpop.f32.mrf.mxu0
        %679 = vmatprep.mubr.bf16.mxu0 0
        %680 = vmatmul.mubr.bf16.gmra.mxu0 %v540
        %v681 = vpop.f32.mrf.mxu0
        %v682 = vadd.f32 %v565, %v681
        %v683 = vpop.f32.mrf.mxu0
        %v684 = vpop.f32.mrf.mxu0
        %v685 = vadd.f32 %v565, %v684
        %v686 = vpop.f32.mrf.mxu0
        %687 = vmatprep.mubr.bf16.mxu0 0
        %688 = vmatmul.mubr.bf16.gmra.mxu0 %v541
        %v689 = vpop.f32.mrf.mxu0
        %v690 = vadd.f32 %v565, %v689
        %v691 = vpop.f32.mrf.mxu0
        %v692 = vpop.f32.mrf.mxu0
        %v693 = vadd.f32 %v565, %v692
        %v694 = vpop.f32.mrf.mxu0
        %695 = vmatprep.mubr.bf16.mxu0 0
        %696 = vmatmul.mubr.bf16.gmra.mxu0 %v542
        %v697 = vpop.f32.mrf.mxu0
        %v698 = vadd.f32 %v565, %v697
        %v699 = vpop.f32.mrf.mxu0
        %v700 = vpop.f32.mrf.mxu0
        %v701 = vadd.f32 %v565, %v700
        %v702 = vpop.f32.mrf.mxu0
        %703 = vmatprep.mubr.bf16.mxu0 0
        %704 = vmatmul.mubr.bf16.gmra.mxu0 %v543
        %v705 = vpop.f32.mrf.mxu0
        %v706 = vadd.f32 %v565, %v705
        %v707 = vpop.f32.mrf.mxu0
        %v708 = vpop.f32.mrf.mxu0
        %v709 = vadd.f32 %v565, %v708
        %v710 = vpop.f32.mrf.mxu0
        %711 = vdwg.mxu0
        %v712 = vmax.f32 %v650, 0.0
        %v713 = vmax.f32 %v653, 0.0
        %v714 = vmax.f32 %v658, 0.0
        %v715 = vmax.f32 %v661, 0.0
        %v716 = vmax.f32 %v666, 0.0
        %v717 = vmax.f32 %v669, 0.0
        %v718 = vmax.f32 %v674, 0.0
        %v719 = vmax.f32 %v677, 0.0
        %v720 = vmax.f32 %v682, 0.0
        %v721 = vmax.f32 %v685, 0.0
        %v722 = vmax.f32 %v690, 0.0
        %v723 = vmax.f32 %v693, 0.0
        %v724 = vmax.f32 %v698, 0.0
        %v725 = vmax.f32 %v701, 0.0
        %v726 = vmax.f32 %v706, 0.0
        %v727 = vmax.f32 %v709, 0.0
        %v728 = vpack.c.bf16 %v713, %v712
        %v729 = vpack.c.bf16 %v715, %v714
        %v730 = vpack.c.bf16 %v717, %v716
        %v731 = vpack.c.bf16 %v719, %v718
        %v732 = vpack.c.bf16 %v721, %v720
        %v733 = vpack.c.bf16 %v723, %v722
        %v734 = vpack.c.bf16 %v725, %v724
        %v735 = vpack.c.bf16 %v727, %v726
        %v736 = vld [vmem:[%s5] sm:$0xf]
        %v737 = vld [vmem:[%s5 + $0x4] sm:$0xf]
        %v738 = vld [vmem:[%s5 + $0x8] sm:$0xf]
        %v739 = vld [vmem:[%s5 + $0xc] sm:$0xf]
        %v740 = vld [vmem:[%s5 + $0x10] sm:$0xf]
        %v741 = vld [vmem:[%s5 + $0x14] sm:$0xf]
        %v742 = vld [vmem:[%s5 + $0x18] sm:$0xf]
        %v743 = vld [vmem:[%s5 + $0x1c] sm:$0xf]
        %v744 = vld [vmem:[%s5 + $0x20] sm:$0xf]
        %v745 = vld [vmem:[%s5 + $0x24] sm:$0xf]
        %v746 = vld [vmem:[%s5 + $0x28] sm:$0xf]
        %v747 = vld [vmem:[%s5 + $0x2c] sm:$0xf]
        %v748 = vld [vmem:[%s5 + $0x30] sm:$0xf]
        %v749 = vld [vmem:[%s5 + $0x34] sm:$0xf]
        %v750 = vld [vmem:[%s5 + $0x38] sm:$0xf]
        %v751 = vld [vmem:[%s5 + $0x3c] sm:$0xf]
        %v752 = vld [vmem:[%s6] sm:$0x1]
        %v754 = vlaneseq
        %v755 = vshrl.u32 %v754, 7
        %v756 = vsub.s32 0, %v755
        %v757 = vrot.slane %v752, %v756
        %v775 = vunpack.c.l.b16 %v736
        %v776 = vunpack.c.l.b16 %v737
        %v777 = vunpack.c.l.b16 %v738
        %v778 = vunpack.c.l.b16 %v739
        %v779 = vunpack.c.l.b16 %v740
        %v780 = vunpack.c.l.b16 %v741
        %v781 = vunpack.c.l.b16 %v742
        %v782 = vunpack.c.l.b16 %v743
        %v783 = vunpack.c.l.b16 %v744
        %v784 = vunpack.c.l.b16 %v745
        %v785 = vunpack.c.l.b16 %v746
        %v786 = vunpack.c.l.b16 %v747
        %v787 = vunpack.c.l.b16 %v748
        %v788 = vunpack.c.l.b16 %v749
        %v789 = vunpack.c.l.b16 %v750
        %v790 = vunpack.c.l.b16 %v751
        %v791 = vpack.c.b16 %v776, %v775
        %v792 = vpack.c.b16 %v778, %v777
        %v793 = vpack.c.b16 %v780, %v779
        %v794 = vpack.c.b16 %v782, %v781
        %v795 = vpack.c.b16 %v784, %v783
        %v796 = vpack.c.b16 %v786, %v785
        %v797 = vpack.c.b16 %v788, %v787
        %v798 = vpack.c.b16 %v790, %v789
        %807 = vmatprep.subr.bf16.mxu0 0
        %808 = vmatpush1.bf16.msra.mxu0 %v798
        %809 = vmatprep.subr.bf16.mxu0 0
        %810 = vmatpush1.bf16.msra.mxu0 %v797
        %811 = vmatprep.subr.bf16.mxu0 0
        %812 = vmatpush1.bf16.msra.mxu0 %v796
        %813 = vmatprep.subr.bf16.mxu0 0
        %814 = vmatpush1.bf16.msra.mxu0 %v795
        %815 = vmatprep.subr.bf16.mxu0 0
        %816 = vmatpush1.bf16.msra.mxu0 %v794
        %817 = vmatprep.subr.bf16.mxu0 0
        %818 = vmatpush1.bf16.msra.mxu0 %v793
        %819 = vmatprep.subr.bf16.mxu0 0
        %820 = vmatpush1.bf16.msra.mxu0 %v792
        %821 = vmatprep.subr.bf16.mxu0 0
        %822 = vmatpush1.bf16.msra.mxu0 %v791
        %823 = vmatprep.subr.bf16.mxu0 0
        %824 = vmatpush2.bf16.msra.mxu0 0
        %825 = vmatprep.subr.bf16.mxu0 0
        %826 = vmatpush2.bf16.msra.mxu0 0
        %827 = vmatprep.subr.bf16.mxu0 0
        %828 = vmatpush2.bf16.msra.mxu0 0
        %829 = vmatprep.subr.bf16.mxu0 0
        %830 = vmatpush2.bf16.msra.mxu0 0
        %831 = vmatprep.subr.bf16.mxu0 0
        %832 = vmatpush2.bf16.msra.mxu0 0
        %833 = vmatprep.subr.bf16.mxu0 0
        %834 = vmatpush2.bf16.msra.mxu0 0
        %835 = vmatprep.subr.bf16.mxu0 0
        %836 = vmatpush2.bf16.msra.mxu0 0
        %837 = vmatprep.subr.bf16.mxu0 0
        %838 = vmatpush2.bf16.msra.mxu0 0
        %839 = vmatprep.mubr.bf16.mxu0 0
        %840 = vmatmul.mubr.bf16.gmra.mxu0 %v728
        %v841 = vpop.f32.mrf.mxu0
        %v842 = vadd.f32 %v757, %v841
        %v843 = vpop.f32.mrf.mxu0
        %v844 = vpop.f32.mrf.mxu0
        %v845 = vadd.f32 %v757, %v844
        %v846 = vpop.f32.mrf.mxu0
        %847 = vmatprep.mubr.bf16.mxu0 0
        %848 = vmatmul.mubr.bf16.gmra.mxu0 %v729
        %v849 = vpop.f32.mrf.mxu0
        %v850 = vadd.f32 %v757, %v849
        %v851 = vpop.f32.mrf.mxu0
        %v852 = vpop.f32.mrf.mxu0
        %v853 = vadd.f32 %v757, %v852
        %v854 = vpop.f32.mrf.mxu0
        %855 = vmatprep.mubr.bf16.mxu0 0
        %856 = vmatmul.mubr.bf16.gmra.mxu0 %v730
        %v857 = vpop.f32.mrf.mxu0
        %v858 = vadd.f32 %v757, %v857
        %v859 = vpop.f32.mrf.mxu0
        %v860 = vpop.f32.mrf.mxu0
        %v861 = vadd.f32 %v757, %v860
        %v862 = vpop.f32.mrf.mxu0
        %863 = vmatprep.mubr.bf16.mxu0 0
        %864 = vmatmul.mubr.bf16.gmra.mxu0 %v731
        %v865 = vpop.f32.mrf.mxu0
        %v866 = vadd.f32 %v757, %v865
        %v867 = vpop.f32.mrf.mxu0
        %v868 = vpop.f32.mrf.mxu0
        %v869 = vadd.f32 %v757, %v868
        %v870 = vpop.f32.mrf.mxu0
        %871 = vmatprep.mubr.bf16.mxu0 0
        %872 = vmatmul.mubr.bf16.gmra.mxu0 %v732
        %v873 = vpop.f32.mrf.mxu0
        %v874 = vadd.f32 %v757, %v873
        %v875 = vpop.f32.mrf.mxu0
        %v876 = vpop.f32.mrf.mxu0
        %v877 = vadd.f32 %v757, %v876
        %v878 = vpop.f32.mrf.mxu0
        %879 = vmatprep.mubr.bf16.mxu0 0
        %880 = vmatmul.mubr.bf16.gmra.mxu0 %v733
        %v881 = vpop.f32.mrf.mxu0
        %v882 = vadd.f32 %v757, %v881
        %v883 = vpop.f32.mrf.mxu0
        %v884 = vpop.f32.mrf.mxu0
        %v885 = vadd.f32 %v757, %v884
        %v886 = vpop.f32.mrf.mxu0
        %887 = vmatprep.mubr.bf16.mxu0 0
        %888 = vmatmul.mubr.bf16.gmra.mxu0 %v734
        %v889 = vpop.f32.mrf.mxu0
        %v890 = vadd.f32 %v757, %v889
        %v891 = vpop.f32.mrf.mxu0
        %v892 = vpop.f32.mrf.mxu0
        %v893 = vadd.f32 %v757, %v892
        %v894 = vpop.f32.mrf.mxu0
        %895 = vmatprep.mubr.bf16.mxu0 0
        %896 = vmatmul.mubr.bf16.gmra.mxu0 %v735
        %v897 = vpop.f32.mrf.mxu0
        %v898 = vadd.f32 %v757, %v897
        %v899 = vpop.f32.mrf.mxu0
        %v900 = vpop.f32.mrf.mxu0
        %v901 = vadd.f32 %v757, %v900
        %v902 = vpop.f32.mrf.mxu0
        %903 = vdwg.mxu0
        %v904 = vmax.f32 %v842, 0.0
        %v905 = vmax.f32 %v845, 0.0
        %v906 = vmax.f32 %v850, 0.0
        %v907 = vmax.f32 %v853, 0.0
        %v908 = vmax.f32 %v858, 0.0
        %v909 = vmax.f32 %v861, 0.0
        %v910 = vmax.f32 %v866, 0.0
        %v911 = vmax.f32 %v869, 0.0
        %v912 = vmax.f32 %v874, 0.0
        %v913 = vmax.f32 %v877, 0.0
        %v914 = vmax.f32 %v882, 0.0
        %v915 = vmax.f32 %v885, 0.0
        %v916 = vmax.f32 %v890, 0.0
        %v917 = vmax.f32 %v893, 0.0
        %v918 = vmax.f32 %v898, 0.0
        %v919 = vmax.f32 %v901, 0.0
        %v920 = vpack.c.bf16 %v905, %v904
        %v921 = vpack.c.bf16 %v907, %v906
        %v922 = vpack.c.bf16 %v909, %v908
        %v923 = vpack.c.bf16 %v911, %v910
        %v924 = vpack.c.bf16 %v913, %v912
        %v925 = vpack.c.bf16 %v915, %v914
        %v926 = vpack.c.bf16 %v917, %v916
        %v927 = vpack.c.bf16 %v919, %v918
        %v928 = vld [vmem:[%s7] sm:$0xf]
        %v929 = vld [vmem:[%s7 + $0x4] sm:$0xf]
        %v930 = vld [vmem:[%s7 + $0x8] sm:$0xf]
        %v931 = vld [vmem:[%s7 + $0xc] sm:$0xf]
        %v932 = vld [vmem:[%s7 + $0x10] sm:$0xf]
        %v933 = vld [vmem:[%s7 + $0x14] sm:$0xf]
        %v934 = vld [vmem:[%s7 + $0x18] sm:$0xf]
        %v935 = vld [vmem:[%s7 + $0x1c] sm:$0xf]
        %v936 = vld [vmem:[%s7 + $0x20] sm:$0xf]
        %v937 = vld [vmem:[%s7 + $0x24] sm:$0xf]
        %v938 = vld [vmem:[%s7 + $0x28] sm:$0xf]
        %v939 = vld [vmem:[%s7 + $0x2c] sm:$0xf]
        %v940 = vld [vmem:[%s7 + $0x30] sm:$0xf]
        %v941 = vld [vmem:[%s7 + $0x34] sm:$0xf]
        %v942 = vld [vmem:[%s7 + $0x38] sm:$0xf]
        %v943 = vld [vmem:[%s7 + $0x3c] sm:$0xf]
        %v944 = vld [vmem:[%s8] sm:$0x1]
        %v946 = vlaneseq
        %v947 = vshrl.u32 %v946, 7
        %v948 = vsub.s32 0, %v947
        %v949 = vrot.slane %v944, %v948
        %v967 = vunpack.c.l.b16 %v928
        %v968 = vunpack.c.l.b16 %v929
        %v969 = vunpack.c.l.b16 %v930
        %v970 = vunpack.c.l.b16 %v931
        %v971 = vunpack.c.l.b16 %v932
        %v972 = vunpack.c.l.b16 %v933
        %v973 = vunpack.c.l.b16 %v934
        %v974 = vunpack.c.l.b16 %v935
        %v975 = vunpack.c.l.b16 %v936
        %v976 = vunpack.c.l.b16 %v937
        %v977 = vunpack.c.l.b16 %v938
        %v978 = vunpack.c.l.b16 %v939
        %v979 = vunpack.c.l.b16 %v940
        %v980 = vunpack.c.l.b16 %v941
        %v981 = vunpack.c.l.b16 %v942
        %v982 = vunpack.c.l.b16 %v943
        %v983 = vpack.c.b16 %v968, %v967
        %v984 = vpack.c.b16 %v970, %v969
        %v985 = vpack.c.b16 %v972, %v971
        %v986 = vpack.c.b16 %v974, %v973
        %v987 = vpack.c.b16 %v976, %v975
        %v988 = vpack.c.b16 %v978, %v977
        %v989 = vpack.c.b16 %v980, %v979
        %v990 = vpack.c.b16 %v982, %v981
        %999 = vmatprep.subr.bf16.mxu0 0
        %1000 = vmatpush1.bf16.msra.mxu0 %v990
        %1001 = vmatprep.subr.bf16.mxu0 0
        %1002 = vmatpush1.bf16.msra.mxu0 %v989
        %1003 = vmatprep.subr.bf16.mxu0 0
        %1004 = vmatpush1.bf16.msra.mxu0 %v988
        %1005 = vmatprep.subr.bf16.mxu0 0
        %1006 = vmatpush1.bf16.msra.mxu0 %v987
        %1007 = vmatprep.subr.bf16.mxu0 0
        %1008 = vmatpush1.bf16.msra.mxu0 %v986
        %1009 = vmatprep.subr.bf16.mxu0 0
        %1010 = vmatpush1.bf16.msra.mxu0 %v985
        %1011 = vmatprep.subr.bf16.mxu0 0
        %1012 = vmatpush1.bf16.msra.mxu0 %v984
        %1013 = vmatprep.subr.bf16.mxu0 0
        %1014 = vmatpush1.bf16.msra.mxu0 %v983
        %1015 = vmatprep.subr.bf16.mxu0 0
        %1016 = vmatpush2.bf16.msra.mxu0 0
        %1017 = vmatprep.subr.bf16.mxu0 0
        %1018 = vmatpush2.bf16.msra.mxu0 0
        %1019 = vmatprep.subr.bf16.mxu0 0
        %1020 = vmatpush2.bf16.msra.mxu0 0
        %1021 = vmatprep.subr.bf16.mxu0 0
        %1022 = vmatpush2.bf16.msra.mxu0 0
        %1023 = vmatprep.subr.bf16.mxu0 0
        %1024 = vmatpush2.bf16.msra.mxu0 0
        %1025 = vmatprep.subr.bf16.mxu0 0
        %1026 = vmatpush2.bf16.msra.mxu0 0
        %1027 = vmatprep.subr.bf16.mxu0 0
        %1028 = vmatpush2.bf16.msra.mxu0 0
        %1029 = vmatprep.subr.bf16.mxu0 0
        %1030 = vmatpush2.bf16.msra.mxu0 0
        %1031 = vmatprep.mubr.bf16.mxu0 0
        %1032 = vmatmul.mubr.bf16.gmra.mxu0 %v920
        %v1033 = vpop.f32.mrf.mxu0
        %v1034 = vadd.f32 %v949, %v1033
        %v1035 = vpop.f32.mrf.mxu0
        %v1036 = vpop.f32.mrf.mxu0
        %v1037 = vadd.f32 %v949, %v1036
        %v1038 = vpop.f32.mrf.mxu0
        %1039 = vmatprep.mubr.bf16.mxu0 0
        %1040 = vmatmul.mubr.bf16.gmra.mxu0 %v921
        %v1041 = vpop.f32.mrf.mxu0
        %v1042 = vadd.f32 %v949, %v1041
        %v1043 = vpop.f32.mrf.mxu0
        %v1044 = vpop.f32.mrf.mxu0
        %v1045 = vadd.f32 %v949, %v1044
        %v1046 = vpop.f32.mrf.mxu0
        %1047 = vmatprep.mubr.bf16.mxu0 0
        %1048 = vmatmul.mubr.bf16.gmra.mxu0 %v922
        %v1049 = vpop.f32.mrf.mxu0
        %v1050 = vadd.f32 %v949, %v1049
        %v1051 = vpop.f32.mrf.mxu0
        %v1052 = vpop.f32.mrf.mxu0
        %v1053 = vadd.f32 %v949, %v1052
        %v1054 = vpop.f32.mrf.mxu0
        %1055 = vmatprep.mubr.bf16.mxu0 0
        %1056 = vmatmul.mubr.bf16.gmra.mxu0 %v923
        %v1057 = vpop.f32.mrf.mxu0
        %v1058 = vadd.f32 %v949, %v1057
        %v1059 = vpop.f32.mrf.mxu0
        %v1060 = vpop.f32.mrf.mxu0
        %v1061 = vadd.f32 %v949, %v1060
        %v1062 = vpop.f32.mrf.mxu0
        %1063 = vmatprep.mubr.bf16.mxu0 0
        %1064 = vmatmul.mubr.bf16.gmra.mxu0 %v924
        %v1065 = vpop.f32.mrf.mxu0
        %v1066 = vadd.f32 %v949, %v1065
        %v1067 = vpop.f32.mrf.mxu0
        %v1068 = vpop.f32.mrf.mxu0
        %v1069 = vadd.f32 %v949, %v1068
        %v1070 = vpop.f32.mrf.mxu0
        %1071 = vmatprep.mubr.bf16.mxu0 0
        %1072 = vmatmul.mubr.bf16.gmra.mxu0 %v925
        %v1073 = vpop.f32.mrf.mxu0
        %v1074 = vadd.f32 %v949, %v1073
        %v1075 = vpop.f32.mrf.mxu0
        %v1076 = vpop.f32.mrf.mxu0
        %v1077 = vadd.f32 %v949, %v1076
        %v1078 = vpop.f32.mrf.mxu0
        %1079 = vmatprep.mubr.bf16.mxu0 0
        %1080 = vmatmul.mubr.bf16.gmra.mxu0 %v926
        %v1081 = vpop.f32.mrf.mxu0
        %v1082 = vadd.f32 %v949, %v1081
        %v1083 = vpop.f32.mrf.mxu0
        %v1084 = vpop.f32.mrf.mxu0
        %v1085 = vadd.f32 %v949, %v1084
        %v1086 = vpop.f32.mrf.mxu0
        %1087 = vmatprep.mubr.bf16.mxu0 0
        %1088 = vmatmul.mubr.bf16.gmra.mxu0 %v927
        %v1089 = vpop.f32.mrf.mxu0
        %v1090 = vadd.f32 %v949, %v1089
        %v1091 = vpop.f32.mrf.mxu0
        %v1092 = vpop.f32.mrf.mxu0
        %v1093 = vadd.f32 %v949, %v1092
        %v1094 = vpop.f32.mrf.mxu0
        %1095 = vdwg.mxu0
        %v1096 = vpack.c.bf16 %v1037, %v1034
        %v1097 = vpack.c.bf16 %v1045, %v1042
        %v1098 = vpack.c.bf16 %v1053, %v1050
        %v1099 = vpack.c.bf16 %v1061, %v1058
        %v1100 = vpack.c.bf16 %v1069, %v1066
        %v1101 = vpack.c.bf16 %v1077, %v1074
        %v1102 = vpack.c.bf16 %v1085, %v1082
        %v1103 = vpack.c.bf16 %v1093, %v1090
        %v1112 = vunpack.c.l.b16 %v1096
        %v1113 = vunpack.c.h.b16 %v1096
        %v1114 = vunpack.c.l.b16 %v1097
        %v1115 = vunpack.c.h.b16 %v1097
        %v1116 = vunpack.c.l.b16 %v1098
        %v1117 = vunpack.c.h.b16 %v1098
        %v1118 = vunpack.c.l.b16 %v1099
        %v1119 = vunpack.c.h.b16 %v1099
        %v1120 = vunpack.c.l.b16 %v1100
        %v1121 = vunpack.c.h.b16 %v1100
        %v1122 = vunpack.c.l.b16 %v1101
        %v1123 = vunpack.c.h.b16 %v1101
        %v1124 = vunpack.c.l.b16 %v1102
        %v1125 = vunpack.c.h.b16 %v1102
        %v1126 = vunpack.c.l.b16 %v1103
        %v1127 = vunpack.c.h.b16 %v1103
        %v1128 = vpack.c.b16 %v1112, %v1112
        %v1129 = vpack.c.b16 %v1113, %v1113
        %v1130 = vpack.c.b16 %v1114, %v1114
        %v1131 = vpack.c.b16 %v1115, %v1115
        %v1132 = vpack.c.b16 %v1116, %v1116
        %v1133 = vpack.c.b16 %v1117, %v1117
        %v1134 = vpack.c.b16 %v1118, %v1118
        %v1135 = vpack.c.b16 %v1119, %v1119
        %v1136 = vpack.c.b16 %v1120, %v1120
        %v1137 = vpack.c.b16 %v1121, %v1121
        %v1138 = vpack.c.b16 %v1122, %v1122
        %v1139 = vpack.c.b16 %v1123, %v1123
        %v1140 = vpack.c.b16 %v1124, %v1124
        %v1141 = vpack.c.b16 %v1125, %v1125
        %v1142 = vpack.c.b16 %v1126, %v1126
        %v1143 = vpack.c.b16 %v1127, %v1127
        %1160 = vst [vmem:[%s326] sm:$0xf] %v1128
        %1161 = vst [vmem:[%s326 + $0x4] sm:$0xf] %v1129
        %1162 = vst [vmem:[%s326 + $0x8] sm:$0xf] %v1130
        %1163 = vst [vmem:[%s326 + $0xc] sm:$0xf] %v1131
        %1164 = vst [vmem:[%s326 + $0x10] sm:$0xf] %v1132
        %1165 = vst [vmem:[%s326 + $0x14] sm:$0xf] %v1133
        %1166 = vst [vmem:[%s326 + $0x18] sm:$0xf] %v1134
        %1167 = vst [vmem:[%s326 + $0x1c] sm:$0xf] %v1135
        %1168 = vst [vmem:[%s326 + $0x20] sm:$0xf] %v1136
        %1169 = vst [vmem:[%s326 + $0x24] sm:$0xf] %v1137
        %1170 = vst [vmem:[%s326 + $0x28] sm:$0xf] %v1138
        %1171 = vst [vmem:[%s326 + $0x2c] sm:$0xf] %v1139
        %1172 = vst [vmem:[%s326 + $0x30] sm:$0xf] %v1140
        %1173 = vst [vmem:[%s326 + $0x34] sm:$0xf] %v1141
        %1174 = vst [vmem:[%s326 + $0x38] sm:$0xf] %v1142
        %1175 = vst [vmem:[%s326 + $0x3c] sm:$0xf] %v1143
        %s1176 = sand.u32 %s225, 1
        %s1177 = scalar_lea.sflag [#allocation3], %s1176
        %s1178 = sand.u32 %s225, 1
        %s1179 = smul.addr %s1178, 64
        %s1180 = scalar_lea.vmem [#allocation2], %s1179
        // Predicated region
        $region57: #{tpu_custom_call.1} parent=55 // pred_check
          %p1181 = pneg %p235
        $region58: #{tpu_custom_call.1} parent=55 // pred_check_branch
          %1183 = sbr.rel (%p1181) target = $region60
        $region59: #{tpu_custom_call.1} parent=55 // pred_region
          %s1184 = smul.u32 16, %s23
          %s1186 = ssub.s32 1024, 1024
          %1187 = vsyncadd %s1177, %s1186
          %s1188 = smul.addr %s1184, 64
          %s1189 = scalar_lea.hbm %s9, %s1188
          %s1190 = sshll.u32 %s1180, 4
          %s1191 = int_to_ptr.vmem [resolvable:$true] %s1190
          %1196 = dma.vmem_to_hbm [thread:$0]  %s1191, 1024, %s1189, %s1177, 64, 64, 4
        $region60: #{tpu_custom_call.1} parent=55 // pred_fallthru
          _
      $region56: #{tpu_custom_call.1} parent=5 // pred_fallthru
        _
      %p1197 = scmp.le.s32.totalorder 2, %s18
      // Predicated region
      $region61: #{tpu_custom_call.1} parent=5 // pred_check
        %p1198 = pneg %p1197
      $region62: #{tpu_custom_call.1} parent=5 // pred_check_branch
        %1200 = sbr.rel (%p1198) target = $region64
      $region63: #{tpu_custom_call.1} parent=5 // pred_region
        %s1201 = ssub.s32 %s18, 2
        // Predicated region
        $region65: #{tpu_custom_call.1} parent=63 // pred_check
          %p1202 = pneg %p241
        $region66: #{tpu_custom_call.1} parent=63 // pred_check_branch
          %1204 = sbr.rel (%p1202) target = $region68
        $region67: #{tpu_custom_call.1} parent=63 // pred_region
          %s1205 = sand.u32 %s226, 1
          %s1206 = scalar_lea.sflag [#allocation3], %s1205
          %s1207 = sand.u32 %s226, 1
          %s1208 = smul.addr %s1207, 64
          %s1209 = scalar_lea.vmem [#allocation2], %s1208
          %1210 = dma.done %s1206, 1024
        $region68: #{tpu_custom_call.1} parent=63 // pred_fallthru
          _
      $region64: #{tpu_custom_call.1} parent=5 // pred_fallthru
        _
    $region6: #{tpu_custom_call.1} parent=1 // loop_footer
      %s22 = sadd.s32 1, %s18
    $region7: #{tpu_custom_call.1} parent=1 // loop_footer_branch
      %17 = sbr.rel target = $region3
    $region8: #{tpu_custom_call.1} parent=1 // loop_exit
      _
    %1211 = vsyncpa [#allocation3], 1
    %s1212 = scalar_lea.sflag [#allocation3], 1
    %1213 = vsyncpa %s1212, 1

</llo_original>
